<compile_context>
chip_gen: v6e
topology: v6e:2x2x1
jax: 0.10.0
libtpu: 0.0.40
codegen_flags: <defaults>
</compile_context>

<pallas_src>
import functools

import jax
import jax.numpy as jnp
from jax.experimental import pallas as pl
from jax.experimental.pallas import tpu as pltpu


# ----------------------------------------------------------------------------
# Kernel 1: inconv (1x1 conv, tiny channel counts) -> pure VPU broadcast-FMA.
# Native (N, C_in, H*W) layout, grid over images, SMEM scalar weights,
# one dense (C_out, HW) store per grid step.
# ----------------------------------------------------------------------------
def _inconv_kernel(w_ref, b_ref, x_ref, o_ref):
    c_out, c_in = w_ref.shape                          # static python ints
    x = x_ref[...]                                     # (C_in, HW) f32
    rows = []
    for c in range(c_out):                             # static unroll (3)
        acc = w_ref[c, 0] * x[0:1, :]
        for k in range(1, c_in):                       # static unroll (C_in-1)
            acc = acc + w_ref[c, k] * x[k:k + 1, :]
        rows.append(acc + b_ref[c])                    # scalar bias, no loop bcast
    o_ref[...] = jnp.concatenate(rows, axis=0)         # single dense store


def inconv_1x1(x_nchw, w, b):
    n, c_in, h, wd = x_nchw.shape
    c_out = w.shape[0]
    hw = h * wd
    x3 = x_nchw.reshape(n, c_in, hw)                   # metadata-only reshape
    out = pl.pallas_call(
        _inconv_kernel,
        out_shape=jax.ShapeDtypeStruct((n, c_out, hw), jnp.float32),
        grid=(n,),
        in_specs=[
            pl.BlockSpec(memory_space=pltpu.MemorySpace.SMEM),     # w scalars
            pl.BlockSpec(memory_space=pltpu.MemorySpace.SMEM),     # b scalars
            pl.BlockSpec((pl.Squeezed(), c_in, hw), lambda i: (i, 0, 0)),
        ],
        out_specs=pl.BlockSpec((pl.Squeezed(), c_out, hw), lambda i: (i, 0, 0)),
        compiler_params=pltpu.CompilerParams(dimension_semantics=("parallel",)),
    )(w, b, x3)
    return out.reshape(n, c_out, h, wd)                # (N, C_out, H, W)


# ----------------------------------------------------------------------------
# Kernel 2: fused box-predictor + mask head.
#   * grid over RoIs on the native (R, 256, HW) mask-feature layout
#     (Squeezed leading dim, no host transpose/pad);
#   * box head ((R,1024)x(1024,n_pad) bf16 MXU matmul) computed once on the
#     first grid step into a VMEM-resident, constant-index output block;
#   * per-RoI mask 1x1-conv matmul + bias + optional channel softmax fused
#     before a single store; activations cast f32->bf16 in-VMEM.
# ----------------------------------------------------------------------------
def _fused_heads_kernel(mask_w_ref, mask_b_ref, x_ref,
                        box_f_ref, box_w_ref, box_b_ref,
                        mask_o_ref, box_o_ref, *, apply_softmax):
    # Box predictor: output block index is constant across the grid, so it
    # stays resident in VMEM; compute it exactly once.
    @pl.when(pl.program_id(0) == 0)
    def _():
        f = box_f_ref[...].astype(jnp.bfloat16)                  # in-VMEM cast
        box_o_ref[...] = (
            jnp.dot(f, box_w_ref[...], preferred_element_type=jnp.float32)
            + box_b_ref[...]
        )

    # Mask head for the current RoI: (C_out,256)x(256,HW) + bias (+ softmax).
    x = x_ref[...].astype(jnp.bfloat16)                          # in-VMEM cast
    y = jnp.dot(mask_w_ref[...], x, preferred_element_type=jnp.float32)
    y = y + mask_b_ref[...]                                      # (C_out, HW)
    if apply_softmax:                                            # trace-time flag
        m = jnp.max(y, axis=0, keepdims=True)
        e = jnp.exp(y - m)
        s = jnp.sum(e, axis=0, keepdims=True)
        y = e * pl.reciprocal(s, approx=True)                    # EUP reciprocal
    mask_o_ref[...] = y


def fused_heads(roi_feats, mask_feats, mask_w_bf16, mask_b_col,
                box_w_bf16, box_b_f32, n_classes, apply_softmax):
    r_mask, c_in, h, wd = mask_feats.shape
    hw = h * wd
    c_out = mask_w_bf16.shape[0]
    r_box, k_feat = roi_feats.shape
    n_pad = box_w_bf16.shape[1]
    x3 = mask_feats.reshape(r_mask, c_in, hw)                    # metadata-only

    kernel = functools.partial(_fused_heads_kernel, apply_softmax=apply_softmax)
    mask_out, box_out = pl.pallas_call(
        kernel,
        out_shape=(
            jax.ShapeDtypeStruct((r_mask, c_out, hw), jnp.float32),
            jax.ShapeDtypeStruct((r_box, n_pad), jnp.float32),
        ),
        grid=(r_mask,),
        in_specs=[
            pl.BlockSpec((c_out, c_in), lambda i: (0, 0)),               # mask W bf16
            pl.BlockSpec((c_out, 1), lambda i: (0, 0)),                  # mask b f32
            pl.BlockSpec((pl.Squeezed(), c_in, hw), lambda i: (i, 0, 0)),  # mask feats f32
            pl.BlockSpec((r_box, k_feat), lambda i: (0, 0)),             # roi feats f32
            pl.BlockSpec((k_feat, n_pad), lambda i: (0, 0)),             # box W bf16
            pl.BlockSpec((1, n_pad), lambda i: (0, 0)),                  # box b f32
        ],
        out_specs=(
            pl.BlockSpec((pl.Squeezed(), c_out, hw), lambda i: (i, 0, 0)),
            pl.BlockSpec((r_box, n_pad), lambda i: (0, 0)),
        ),
        compiler_params=pltpu.CompilerParams(
            # The box output block index is constant across the grid
            # (accumulator-style), so the RoI axis must be "arbitrary".
            dimension_semantics=("arbitrary",),
        ),
    )(mask_w_bf16, mask_b_col, x3, roi_feats, box_w_bf16, box_b_f32)

    cls_logits = box_out[:, :n_classes]
    bbox_deltas = box_out[:, n_classes:5 * n_classes]
    mask_out = mask_out.reshape(r_mask, c_out, h, wd)
    return cls_logits, bbox_deltas, mask_out


# ----------------------------------------------------------------------------
# MaskRCNN wrapper (parameters initialized deterministically in-script).
# ----------------------------------------------------------------------------
class MaskRCNNPallas:
    def __init__(self, n_channels=3, n_classes=21, softmax_out=False, seed=0):
        self.n_channels = n_channels
        self.n_classes = n_classes
        self.has_softmax = softmax_out

        keys = jax.random.split(jax.random.PRNGKey(seed), 8)
        # inconv = FwdConv(n_channels, 3, kernel_size=1, padding=0)
        if n_channels != 3:
            self.inconv_w = 0.05 * jax.random.normal(keys[0], (3, n_channels), jnp.float32)
            self.inconv_b = 0.01 * jax.random.normal(keys[1], (3,), jnp.float32)
        else:
            self.inconv_w = None
            self.inconv_b = None
        # roi_heads.box_predictor: Linear(1024, n_classes), Linear(1024, 4*n_classes)
        self.cls_w = 0.02 * jax.random.normal(keys[2], (1024, n_classes), jnp.float32)
        self.cls_b = 0.01 * jax.random.normal(keys[3], (1, n_classes), jnp.float32)
        self.bbox_w = 0.02 * jax.random.normal(keys[4], (1024, 4 * n_classes), jnp.float32)
        self.bbox_b = 0.01 * jax.random.normal(keys[5], (1, 4 * n_classes), jnp.float32)
        # roi_heads.mask_predictor.mask_fcn_logits: Conv2d(256, n_classes, 1)
        self.mask_w = 0.02 * jax.random.normal(keys[6], (n_classes, 256), jnp.float32)
        self.mask_b = 0.01 * jax.random.normal(keys[7], (n_classes,), jnp.float32)

        # Fused + padded box-head params: one (1024, 5*n_classes) weight, output
        # lane dim padded to a multiple of 128 (dense stores, half the weight DMA).
        box_w = jnp.concatenate([self.cls_w, self.bbox_w], axis=1)      # (1024, 105)
        box_b = jnp.concatenate([self.cls_b, self.bbox_b], axis=1)      # (1, 105)
        pad = (-box_w.shape[1]) % 128
        self.box_w_bf16 = jnp.pad(box_w, ((0, 0), (0, pad))).astype(jnp.bfloat16)
        self.box_b_f32 = jnp.pad(box_b, ((0, 0), (0, pad)))             # f32 (1, 128)
        # Mask head params: bf16 weights / f32 bias column (channels NOT padded;
        # padded channels would corrupt the in-kernel softmax denominator).
        self.mask_w_bf16 = self.mask_w.astype(jnp.bfloat16)
        self.mask_b_col = self.mask_b.reshape(n_classes, 1)

    def __call__(self, x, roi_feats, mask_feats):
        # self.inconv (only when n_channels != 3), as in the PyTorch forward.
        if self.inconv_w is not None:
            x = inconv_1x1(x, self.inconv_w, self.inconv_b)

        # TODO(synk): self.body (fasterrcnn/maskrcnn_resnet50_fpn backbone, RPN,
        # NMS, RoIAlign) is not translated; synthetic roi_feats / mask_feats
        # stand in for its pooled outputs.
        cls_logits, bbox_deltas, mask_out = fused_heads(
            roi_feats, mask_feats, self.mask_w_bf16, self.mask_b_col,
            self.box_w_bf16, self.box_b_f32, self.n_classes, self.has_softmax,
        )

        return {
            "inconv_out": x,
            "cls_logits": cls_logits,
            "bbox_deltas": bbox_deltas,
            "mask_out": mask_out,
        }


if __name__ == "__main__":
    key = jax.random.PRNGKey(0)
    k_img, k_roi, k_mask = jax.random.split(key, 3)

    # Small deterministic inputs consistent with the module's forward.
    N, C, H, W = 2, 4, 16, 16          # n_channels=4 != 3 -> inconv path exercised
    R = 8                              # number of synthetic RoIs
    x = jax.random.normal(k_img, (N, C, H, W), jnp.float32)
    roi_feats = jax.random.normal(k_roi, (R, 1024), jnp.float32)           # pooled box feats
    mask_feats = jax.random.normal(k_mask, (R, 256, 14, 14), jnp.float32)  # pooled mask feats

    model = MaskRCNNPallas(n_channels=C, n_classes=21, softmax_out=True, seed=0)
    out = model(x, roi_feats, mask_feats)
    out = jax.tree_util.tree_map(jax.block_until_ready, out)

    # Shape checks.
    assert out["inconv_out"].shape == (N, 3, H, W)
    assert out["cls_logits"].shape == (R, 21)
    assert out["bbox_deltas"].shape == (R, 84)
    assert out["mask_out"].shape == (R, 21, 14, 14)

    # Numerical checks against plain-JAX references (bf16-rounded MXU inputs).
    ref_in = (
        jnp.einsum("oc,nchw->nohw", model.inconv_w, x)
        + model.inconv_b[None, :, None, None]
    )
    assert bool(jnp.allclose(out["inconv_out"], ref_in, atol=1e-4, rtol=1e-4))

    f_bf = roi_feats.astype(jnp.bfloat16).astype(jnp.float32)
    cls_w_r = model.cls_w.astype(jnp.bfloat16).astype(jnp.float32)
    bbox_w_r = model.bbox_w.astype(jnp.bfloat16).astype(jnp.float32)
    ref_cls = f_bf @ cls_w_r + model.cls_b
    ref_box = f_bf @ bbox_w_r + model.bbox_b
    assert bool(jnp.allclose(out["cls_logits"], ref_cls, atol=5e-3, rtol=5e-3))
    assert bool(jnp.allclose(out["bbox_deltas"], ref_box, atol=5e-3, rtol=5e-3))

    mf_bf = mask_feats.astype(jnp.bfloat16).astype(jnp.float32)
    mw_r = model.mask_w.astype(jnp.bfloat16).astype(jnp.float32)
    ref_logits = jnp.einsum("oc,rchw->rohw", mw_r, mf_bf) + model.mask_b[None, :, None, None]
    ref_mask = jax.nn.softmax(ref_logits, axis=1)
    assert bool(jnp.allclose(out["mask_out"], ref_mask, atol=1e-2, rtol=1e-2))
    # Channel softmax must sum to ~1 per pixel (approx reciprocal -> ~1e-3).
    assert bool(
        jnp.allclose(jnp.sum(out["mask_out"], axis=1), 1.0, atol=1e-2, rtol=1e-2)
    )

    print("KERNEL_OK")
</pallas_src>

<mosaic_0001>
module attributes {stable_mosaic.version = 11 : i64} {
  func.func @_inconv_kernel(%arg0: i32, %arg1: memref<3x4xf32, #tpu.memory_space<smem>>, %arg2: memref<3xf32, #tpu.memory_space<smem>>, %arg3: memref<1x4x256xf32, #tpu.memory_space<vmem>>, %arg4: memref<1x3x256xf32, #tpu.memory_space<vmem>>) attributes {dimension_semantics = [#tpu.dimension_semantics<parallel>], iteration_bounds = array<i64: 2>, scalar_prefetch = 0 : i64, scratch_operands = 0 : i64, tpu.core_type = #tpu.core_type<tc>, window_params = [{transform_indices = @transform_0, window_bounds = array<i64: 3, 4>}, {transform_indices = @transform_1, window_bounds = array<i64: 3>}, {transform_indices = @transform_2, window_bounds = array<i64: 1, 4, 256>}, {transform_indices = @transform_3, window_bounds = array<i64: 1, 3, 256>}]} {
    %c0 = arith.constant 0 : index
    %c0_0 = arith.constant 0 : index
    %c0_1 = arith.constant 0 : index
    %0 = vector.load %arg3[%c0, %c0_0, %c0_1] : memref<1x4x256xf32, #tpu.memory_space<vmem>>, vector<1x4x256xf32>
    %1 = vector.shape_cast %0 : vector<1x4x256xf32> to vector<4x256xf32>
    %c0_2 = arith.constant 0 : index
    %c0_3 = arith.constant 0 : index
    %2 = memref.load %arg1[%c0_2, %c0_3] : memref<3x4xf32, #tpu.memory_space<smem>>
    %3 = vector.extract_strided_slice %1 {offsets = [0, 0], sizes = [1, 256], strides = [1, 1]} : vector<4x256xf32> to vector<1x256xf32>
    %4 = vector.broadcast %2 : f32 to vector<1x256xf32>
    %5 = arith.mulf %4, %3 : vector<1x256xf32>
    %c0_4 = arith.constant 0 : index
    %c1 = arith.constant 1 : index
    %6 = memref.load %arg1[%c0_4, %c1] : memref<3x4xf32, #tpu.memory_space<smem>>
    %7 = vector.extract_strided_slice %1 {offsets = [1, 0], sizes = [1, 256], strides = [1, 1]} : vector<4x256xf32> to vector<1x256xf32>
    %8 = vector.broadcast %6 : f32 to vector<1x256xf32>
    %9 = arith.mulf %8, %7 : vector<1x256xf32>
    %10 = arith.addf %5, %9 : vector<1x256xf32>
    %c0_5 = arith.constant 0 : index
    %c2 = arith.constant 2 : index
    %11 = memref.load %arg1[%c0_5, %c2] : memref<3x4xf32, #tpu.memory_space<smem>>
    %12 = vector.extract_strided_slice %1 {offsets = [2, 0], sizes = [1, 256], strides = [1, 1]} : vector<4x256xf32> to vector<1x256xf32>
    %13 = vector.broadcast %11 : f32 to vector<1x256xf32>
    %14 = arith.mulf %13, %12 : vector<1x256xf32>
    %15 = arith.addf %10, %14 : vector<1x256xf32>
    %c0_6 = arith.constant 0 : index
    %c3 = arith.constant 3 : index
    %16 = memref.load %arg1[%c0_6, %c3] : memref<3x4xf32, #tpu.memory_space<smem>>
    %17 = vector.extract_strided_slice %1 {offsets = [3, 0], sizes = [1, 256], strides = [1, 1]} : vector<4x256xf32> to vector<1x256xf32>
    %18 = vector.broadcast %16 : f32 to vector<1x256xf32>
    %19 = arith.mulf %18, %17 : vector<1x256xf32>
    %20 = arith.addf %15, %19 : vector<1x256xf32>
    %c0_7 = arith.constant 0 : index
    %21 = memref.load %arg2[%c0_7] : memref<3xf32, #tpu.memory_space<smem>>
    %22 = vector.broadcast %21 : f32 to vector<1x256xf32>
    %23 = arith.addf %20, %22 : vector<1x256xf32>
    %c1_8 = arith.constant 1 : index
    %c0_9 = arith.constant 0 : index
    %24 = memref.load %arg1[%c1_8, %c0_9] : memref<3x4xf32, #tpu.memory_space<smem>>
    %25 = vector.extract_strided_slice %1 {offsets = [0, 0], sizes = [1, 256], strides = [1, 1]} : vector<4x256xf32> to vector<1x256xf32>
    %26 = vector.broadcast %24 : f32 to vector<1x256xf32>
    %27 = arith.mulf %26, %25 : vector<1x256xf32>
    %c1_10 = arith.constant 1 : index
    %c1_11 = arith.constant 1 : index
    %28 = memref.load %arg1[%c1_10, %c1_11] : memref<3x4xf32, #tpu.memory_space<smem>>
    %29 = vector.extract_strided_slice %1 {offsets = [1, 0], sizes = [1, 256], strides = [1, 1]} : vector<4x256xf32> to vector<1x256xf32>
    %30 = vector.broadcast %28 : f32 to vector<1x256xf32>
    %31 = arith.mulf %30, %29 : vector<1x256xf32>
    %32 = arith.addf %27, %31 : vector<1x256xf32>
    %c1_12 = arith.constant 1 : index
    %c2_13 = arith.constant 2 : index
    %33 = memref.load %arg1[%c1_12, %c2_13] : memref<3x4xf32, #tpu.memory_space<smem>>
    %34 = vector.extract_strided_slice %1 {offsets = [2, 0], sizes = [1, 256], strides = [1, 1]} : vector<4x256xf32> to vector<1x256xf32>
    %35 = vector.broadcast %33 : f32 to vector<1x256xf32>
    %36 = arith.mulf %35, %34 : vector<1x256xf32>
    %37 = arith.addf %32, %36 : vector<1x256xf32>
    %c1_14 = arith.constant 1 : index
    %c3_15 = arith.constant 3 : index
    %38 = memref.load %arg1[%c1_14, %c3_15] : memref<3x4xf32, #tpu.memory_space<smem>>
    %39 = vector.extract_strided_slice %1 {offsets = [3, 0], sizes = [1, 256], strides = [1, 1]} : vector<4x256xf32> to vector<1x256xf32>
    %40 = vector.broadcast %38 : f32 to vector<1x256xf32>
    %41 = arith.mulf %40, %39 : vector<1x256xf32>
    %42 = arith.addf %37, %41 : vector<1x256xf32>
    %c1_16 = arith.constant 1 : index
    %43 = memref.load %arg2[%c1_16] : memref<3xf32, #tpu.memory_space<smem>>
    %44 = vector.broadcast %43 : f32 to vector<1x256xf32>
    %45 = arith.addf %42, %44 : vector<1x256xf32>
    %c2_17 = arith.constant 2 : index
    %c0_18 = arith.constant 0 : index
    %46 = memref.load %arg1[%c2_17, %c0_18] : memref<3x4xf32, #tpu.memory_space<smem>>
    %47 = vector.extract_strided_slice %1 {offsets = [0, 0], sizes = [1, 256], strides = [1, 1]} : vector<4x256xf32> to vector<1x256xf32>
    %48 = vector.broadcast %46 : f32 to vector<1x256xf32>
    %49 = arith.mulf %48, %47 : vector<1x256xf32>
    %c2_19 = arith.constant 2 : index
    %c1_20 = arith.constant 1 : index
    %50 = memref.load %arg1[%c2_19, %c1_20] : memref<3x4xf32, #tpu.memory_space<smem>>
    %51 = vector.extract_strided_slice %1 {offsets = [1, 0], sizes = [1, 256], strides = [1, 1]} : vector<4x256xf32> to vector<1x256xf32>
    %52 = vector.broadcast %50 : f32 to vector<1x256xf32>
    %53 = arith.mulf %52, %51 : vector<1x256xf32>
    %54 = arith.addf %49, %53 : vector<1x256xf32>
    %c2_21 = arith.constant 2 : index
    %c2_22 = arith.constant 2 : index
    %55 = memref.load %arg1[%c2_21, %c2_22] : memref<3x4xf32, #tpu.memory_space<smem>>
    %56 = vector.extract_strided_slice %1 {offsets = [2, 0], sizes = [1, 256], strides = [1, 1]} : vector<4x256xf32> to vector<1x256xf32>
    %57 = vector.broadcast %55 : f32 to vector<1x256xf32>
    %58 = arith.mulf %57, %56 : vector<1x256xf32>
    %59 = arith.addf %54, %58 : vector<1x256xf32>
    %c2_23 = arith.constant 2 : index
    %c3_24 = arith.constant 3 : index
    %60 = memref.load %arg1[%c2_23, %c3_24] : memref<3x4xf32, #tpu.memory_space<smem>>
    %61 = vector.extract_strided_slice %1 {offsets = [3, 0], sizes = [1, 256], strides = [1, 1]} : vector<4x256xf32> to vector<1x256xf32>
    %62 = vector.broadcast %60 : f32 to vector<1x256xf32>
    %63 = arith.mulf %62, %61 : vector<1x256xf32>
    %64 = arith.addf %59, %63 : vector<1x256xf32>
    %c2_25 = arith.constant 2 : index
    %65 = memref.load %arg2[%c2_25] : memref<3xf32, #tpu.memory_space<smem>>
    %66 = vector.broadcast %65 : f32 to vector<1x256xf32>
    %67 = arith.addf %64, %66 : vector<1x256xf32>
    %68 = tpu.concatenate %23, %45, %67 in 0 : vector<1x256xf32>, vector<1x256xf32>, vector<1x256xf32> -> vector<3x256xf32>
    %c0_26 = arith.constant 0 : index
    %c0_27 = arith.constant 0 : index
    %c0_28 = arith.constant 0 : index
    %69 = vector.load %arg4[%c0_26, %c0_27, %c0_28] : memref<1x3x256xf32, #tpu.memory_space<vmem>>, vector<1x3x256xf32>
    %70 = vector.shape_cast %69 : vector<1x3x256xf32> to vector<3x256xf32>
    %71 = vector.shape_cast %68 : vector<3x256xf32> to vector<1x3x256xf32>
    tpu.vector_store %arg4[%c0_26, %c0_27, %c0_28], %71 {strides = array<i32>} : memref<1x3x256xf32, #tpu.memory_space<vmem>>, vector<1x3x256xf32>,
    return
  }
  func.func @transform_0(%arg0: i32) -> (i32, i32) {
    %c0_i32 = arith.constant 0 : i32
    %c0_i32_0 = arith.constant 0 : i32
    %c0_i32_1 = arith.constant 0 : i32
    return %c0_i32, %c0_i32_0 : i32, i32
  }
  func.func @transform_1(%arg0: i32) -> i32 {
    %c0_i32 = arith.constant 0 : i32
    %c0_i32_0 = arith.constant 0 : i32
    return %c0_i32 : i32
  }
  func.func @transform_2(%arg0: i32) -> (i32, i32, i32) {
    %c0_i32 = arith.constant 0 : i32
    %c0_i32_0 = arith.constant 0 : i32
    %c0_i32_1 = arith.constant 0 : i32
    return %arg0, %c0_i32, %c0_i32_0 : i32, i32, i32
  }
  func.func @transform_3(%arg0: i32) -> (i32, i32, i32) {
    %c0_i32 = arith.constant 0 : i32
    %c0_i32_0 = arith.constant 0 : i32
    %c0_i32_1 = arith.constant 0 : i32
    return %arg0, %c0_i32, %c0_i32_0 : i32, i32, i32
  }
}

</mosaic_0001>

<llo_original>
// kernel: tpu_custom_call.1
$region0: #{tpu_custom_call.1}
  #allocation0 [shape = 'u32[]', space=smem, size = 0x4, offset = 0x4, fixed_abs, tag = 'smem constant byte address 0x4 - core index']
  #allocation1 [shape = 'u32[144,128]{1,0:T(1,128)}', space=vmem, size = 0x12000, scoped, tag = 'internal scratch']
  %s0 = inlined_call_operand.hbm [shape: f32[3,4], index: 0, kind: input, shape index: {}]
  %s1 = inlined_call_operand.vmem [shape: f32[3], index: 1, kind: input, shape index: {}]
  %s2 = inlined_call_operand.hbm [shape: f32[2,4,256], index: 2, kind: input, shape index: {}]
  %s3 = inlined_call_operand.vmem [shape: f32[2,3,256], index: 3, kind: output, shape index: {}]
  %s4 = sld [smem:[#allocation0]]
  $region57: #{tpu_custom_call.1} parent=0
    _
  %s6 = ssub.s32 1, %s4
  %s7 = scalar_select 0, %s6, %s4
  $region1: #{tpu_custom_call.1} parent=0
    #allocation2 [shape = 'u8[2048]{0}', space=smem, size = 0x800, scoped, tag = 'input window, operand 0, single buffered']
    #allocation3 [shape = 's32[2]{0}', space=sflag, size = 0x8, scoped, tag = 'scoped memory for tpu_custom_call.1']
    #allocation4 [shape = 's32[2]{0}', space=sflag, size = 0x8, scoped, tag = 'scoped memory for tpu_custom_call.1']
    #allocation5 [shape = 's32[2]{0}', space=sflag, size = 0x8, scoped, tag = 'scoped memory for tpu_custom_call.1']
    #allocation6 [shape = 'u8[512]{0}', space=smem, size = 0x200, scoped, tag = 'input window, operand 1, single buffered']
    #allocation7 [shape = 'u8[8192]{0}', space=vmem, size = 0x2000, scoped, tag = 'input window, operand 2']
    %8 = vsyncpa [#allocation4], 0
    %9 = vsyncpa [#allocation5], 0
    %10 = vsyncpa [#allocation3], 0
    %s11 = scalar_lea.sflag [#allocation3], 1
    %12 = vsyncpa %s11, 0
    loop: start=0, step=1, limit=4
    $region2: #{tpu_custom_call.1} parent=1 // loop_pre_header
      _
    $region3: #{tpu_custom_call.1} parent=1 // loop_header
      %s14 = sphi 0, %s18
      %p15 = scmp.ge.s32.totalorder %s14, 4
      %s22 = sphi 0, %s22
      %s24 = sphi 0, %s22
      %s25 = sphi 0, %s24
      %s39 = sphi 0, %s25
      %s43 = sphi 0, %s43
      %s45 = sphi 0, %s43
      %s46 = sphi 0, %s45
      %s60 = sphi 0, %s46
      %s66 = sphi 0, %s68
      %s69 = sphi 0, %s66
      %s70 = sphi 0, %s69
      %s86 = sphi 0, %s70
      %s92 = sphi 0, %s94
      %s95 = sphi 0, %s92
      %s96 = sphi 0, %s95
      %s112 = sphi 0, %s96
    $region4: #{tpu_custom_call.1} parent=1 // loop_header_branch
      %17 = sbr.rel (%p15) target = $region8
    $region5: #{tpu_custom_call.1} parent=1 // loop_body
      %s19 = ssub.s32 %s14, 1
      %s20 = ssub.s32 %s14, 2
      %s21 = sadd.s32 %s14, 1
      %s23 = sadd.s32 %s22, 1
      %p26 = scmp.eq.s32.totalorder %s14, 1
      %p27 = scmp.ne.s32.totalorder %s22, %s24
      %p28 = scmp.eq.s32.totalorder %s14, 0
      %p29 = por %p27, %p28
      %p30 = scmp.ne.s32.totalorder %s22, %s24
      %p31 = scmp.eq.s32.totalorder %s19, 1
      %p32 = por %p30, %p31
      %p33 = scmp.ne.s32.totalorder %s24, %s25
      %p34 = scmp.eq.s32.totalorder %s19, 0
      %p35 = por %p33, %p34
      %p36 = scmp.ne.s32.totalorder %s24, %s25
      %p37 = scmp.eq.s32.totalorder %s20, 1
      %p38 = por %p36, %p37
      %p40 = scmp.ne.s32.totalorder %s25, %s39
      %p41 = scmp.eq.s32.totalorder %s20, 0
      %p42 = por %p40, %p41
      %s44 = sadd.s32 %s43, 1
      %p47 = scmp.eq.s32.totalorder %s14, 1
      %p48 = scmp.ne.s32.totalorder %s43, %s45
      %p49 = scmp.eq.s32.totalorder %s14, 0
      %p50 = por %p48, %p49
      %p51 = scmp.ne.s32.totalorder %s43, %s45
      %p52 = scmp.eq.s32.totalorder %s19, 1
      %p53 = por %p51, %p52
      %p54 = scmp.ne.s32.totalorder %s45, %s46
      %p55 = scmp.eq.s32.totalorder %s19, 0
      %p56 = por %p54, %p55
      %p57 = scmp.ne.s32.totalorder %s45, %s46
      %p58 = scmp.eq.s32.totalorder %s20, 1
      %p59 = por %p57, %p58
      %p61 = scmp.ne.s32.totalorder %s46, %s60
      %p62 = scmp.eq.s32.totalorder %s20, 0
      %p63 = por %p61, %p62
      %s64 = ssub.s32 %s14, %s21
      %p65 = scmp.eq.s32.totalorder %s64, 0
      %s67 = sadd.s32 %s66, 1
      %s68 = scalar_select %p65, %s66, %s67
      %p71 = pneg %p65
      %p72 = scmp.eq.s32.totalorder %s14, 1
      %p73 = por %p71, %p72
      %p74 = scmp.ne.s32.totalorder %s66, %s69
      %p75 = scmp.eq.s32.totalorder %s14, 0
      %p76 = por %p74, %p75
      %p77 = scmp.ne.s32.totalorder %s66, %s69
      %p78 = scmp.eq.s32.totalorder %s19, 1
      %p79 = por %p77, %p78
      %p80 = scmp.ne.s32.totalorder %s69, %s70
      %p81 = scmp.eq.s32.totalorder %s19, 0
      %p82 = por %p80, %p81
      %p83 = scmp.ne.s32.totalorder %s69, %s70
      %p84 = scmp.eq.s32.totalorder %s20, 1
      %p85 = por %p83, %p84
      %p87 = scmp.ne.s32.totalorder %s70, %s86
      %p88 = scmp.eq.s32.totalorder %s20, 0
      %p89 = por %p87, %p88
      %s90 = ssub.s32 %s14, %s21
      %p91 = scmp.eq.s32.totalorder %s90, 0
      %s93 = sadd.s32 %s92, 1
      %s94 = scalar_select %p91, %s92, %s93
      %p97 = pneg %p91
      %p98 = scmp.eq.s32.totalorder %s14, 1
      %p99 = por %p97, %p98
      %p100 = scmp.ne.s32.totalorder %s92, %s95
      %p101 = scmp.eq.s32.totalorder %s14, 0
      %p102 = por %p100, %p101
      %p103 = scmp.ne.s32.totalorder %s92, %s95
      %p104 = scmp.eq.s32.totalorder %s19, 1
      %p105 = por %p103, %p104
      %p106 = scmp.ne.s32.totalorder %s95, %s96
      %p107 = scmp.eq.s32.totalorder %s19, 0
      %p108 = por %p106, %p107
      %p109 = scmp.ne.s32.totalorder %s95, %s96
      %p110 = scmp.eq.s32.totalorder %s20, 1
      %p111 = por %p109, %p110
      %p113 = scmp.ne.s32.totalorder %s96, %s112
      %p114 = scmp.eq.s32.totalorder %s20, 0
      %p115 = por %p113, %p114
      %p116 = scmp.le.s32.totalorder 1, %s14
      %p117 = scmp.lt.s32.totalorder %s14, 3
      %p118 = pnand %p116, %p117
      %p119 = pneg %p118
      // Predicated region
      $region9: #{tpu_custom_call.1} parent=5 // pred_check
        _
      $region10: #{tpu_custom_call.1} parent=5 // pred_check_branch
        %121 = sbr.rel (%p118) target = $region12
      $region11: #{tpu_custom_call.1} parent=5 // pred_region
        %s122 = ssub.s32 %s14, 1
        // Predicated region
        $region13: #{tpu_custom_call.1} parent=11 // pred_check
          %p123 = pneg %p35
        $region14: #{tpu_custom_call.1} parent=11 // pred_check_branch
          %125 = sbr.rel (%p123) target = $region16
        $region15: #{tpu_custom_call.1} parent=11 // pred_region
          %s127 = ssub.s32 64, 64
          %128 = vsyncadd [#allocation4], %s127
          %131 = dma.hbm_to_smem %s0, 64, [#allocation2], [#allocation4]
        $region16: #{tpu_custom_call.1} parent=11 // pred_fallthru
          _
        // Predicated region
        $region17: #{tpu_custom_call.1} parent=11 // pred_check
          %p132 = pneg %p56
        $region18: #{tpu_custom_call.1} parent=11 // pred_check_branch
          %134 = sbr.rel (%p132) target = $region20
        $region19: #{tpu_custom_call.1} parent=11 // pred_region
          %s136 = ssub.s32 16, 16
          %137 = vsyncadd [#allocation5], %s136
          %s139 = sshll.u32 %s1, 4
          %s140 = int_to_ptr.vmem [resolvable:$true] %s139
          %142 = dma.vmem_to_smem %s140, 16, [#allocation6], [#allocation5]
        $region20: #{tpu_custom_call.1} parent=11 // pred_fallthru
          _
      $region12: #{tpu_custom_call.1} parent=5 // pred_fallthru
        _
      %p143 = scmp.lt.s32.totalorder %s14, 2
      // Predicated region
      $region21: #{tpu_custom_call.1} parent=5 // pred_check
        %p144 = pneg %p143
      $region22: #{tpu_custom_call.1} parent=5 // pred_check_branch
        %146 = sbr.rel (%p144) target = $region24
      $region23: #{tpu_custom_call.1} parent=5 // pred_region
        // Predicated region
        $region25: #{tpu_custom_call.1} parent=23 // pred_check
          %p147 = pneg %p76
        $region26: #{tpu_custom_call.1} parent=23 // pred_check_branch
          %149 = sbr.rel (%p147) target = $region28
        $region27: #{tpu_custom_call.1} parent=23 // pred_region
          %s150 = sand.u32 %s66, 1
          %s151 = scalar_lea.sflag [#allocation3], %s150
          %s152 = sand.u32 %s66, 1
          %s153 = smul.addr %s152, 8
          %s154 = scalar_lea.vmem [#allocation7], %s153
          %s156 = ssub.s32 128, 128
          %157 = vsyncadd %s151, %s156
          %s158 = smul.addr %s14, 2
          %s159 = smul.addr %s158, 64
          %s160 = scalar_lea.hbm %s2, %s159
          %s162 = sshll.u32 %s154, 4
          %s163 = int_to_ptr.vmem [resolvable:$true] %s162
          %165 = dma.hbm_to_vmem [thread:$0]  %s160, 128, %s163, %s151
        $region28: #{tpu_custom_call.1} parent=23 // pred_fallthru
          _
      $region24: #{tpu_custom_call.1} parent=5 // pred_fallthru
        _
      %p166 = scmp.le.s32.totalorder 1, %s14
      %p167 = scmp.lt.s32.totalorder %s14, 3
      %p168 = pnand %p166, %p167
      %p169 = pneg %p168
      // Predicated region
      $region29: #{tpu_custom_call.1} parent=5 // pred_check
        _
      $region30: #{tpu_custom_call.1} parent=5 // pred_check_branch
        %171 = sbr.rel (%p168) target = $region32
      $region31: #{tpu_custom_call.1} parent=5 // pred_region
        %s172 = ssub.s32 %s14, 1
        // Predicated region
        $region33: #{tpu_custom_call.1} parent=31 // pred_check
          %p173 = pneg %p35
        $region34: #{tpu_custom_call.1} parent=31 // pred_check_branch
          %175 = sbr.rel (%p173) target = $region36
        $region35: #{tpu_custom_call.1} parent=31 // pred_region
          %176 = dma.done [#allocation4], 64
        $region36: #{tpu_custom_call.1} parent=31 // pred_fallthru
          _
        // Predicated region
        $region37: #{tpu_custom_call.1} parent=31 // pred_check
          %p177 = pneg %p56
        $region38: #{tpu_custom_call.1} parent=31 // pred_check_branch
          %179 = sbr.rel (%p177) target = $region40
        $region39: #{tpu_custom_call.1} parent=31 // pred_region
          %180 = dma.done [#allocation5], 16
        $region40: #{tpu_custom_call.1} parent=31 // pred_fallthru
          _
        %s181 = sand.u32 %s69, 1
        %s182 = scalar_lea.sflag [#allocation3], %s181
        %s183 = sand.u32 %s69, 1
        %s184 = smul.addr %s183, 8
        %s185 = scalar_lea.vmem [#allocation7], %s184
        // Predicated region
        $region41: #{tpu_custom_call.1} parent=31 // pred_check
          %p186 = pneg %p82
        $region42: #{tpu_custom_call.1} parent=31 // pred_check_branch
          %188 = sbr.rel (%p186) target = $region44
        $region43: #{tpu_custom_call.1} parent=31 // pred_region
          %189 = dma.done %s182, 128
        $region44: #{tpu_custom_call.1} parent=31 // pred_fallthru
          _
        %190 = sfence
        %p191 = pneg %p35
        %p192 = pneg %p32
        %p193 = pneg %p56
        %p194 = pneg %p53
        %s195 = sand.u32 %s69, 1
        %s196 = scalar_lea.sflag [#allocation3], %s195
        %s197 = sand.u32 %s69, 1
        %s198 = smul.addr %s197, 8
        %s199 = scalar_lea.vmem [#allocation7], %s198
        %p200 = pneg %p82
        %p201 = pneg %p79
        %p202 = pneg %p108
        %p203 = pneg %p105
        %p204 = scmp.lt.s32.totalorder %s19, 1
        %s205 = scalar_select %p204, %s19, 1
        %s206 = smul.addr %s205, 2
        %s207 = smul.addr %s206, 4
        %s208 = scalar_lea.vmem %s3, %s207
        %p209 = scmp.lt.s32.totalorder %s19, 1
        %s210 = scalar_select %p209, %s19, 1
        %s211 = smul.addr %s210, 2
        %s212 = smul.addr %s211, 4
        %s213 = scalar_lea.vmem %s3, %s212
        %v214 = vld [vmem:[%s185] sm:$0xff]
        %s215 = sld [smem:[#allocation2]]
        %v216 = vstv %s215
        %v217 = vmul.f32 %v216, %v214
        %s218 = sld [smem:[#allocation2 + $0x1]]
        %v219 = vstv %s218
        %v220 = vmul.f32 %v219, %v214
        %v222 = vrot.slane %v220, 5
        %v223 = vrot.slane %v222, 4
        %v225 = vadd.f32 %v217, %v223
        %s226 = sld [smem:[#allocation2 + $0x2]]
        %v227 = vstv %s226
        %v228 = vmul.f32 %v227, %v214
        %v230 = vrot.slane %v228, 6
        %v231 = vrot.slane %v230, 4
        %v233 = vadd.f32 %v225, %v231
        %s234 = sld [smem:[#allocation2 + $0x3]]
        %v235 = vstv %s234
        %v236 = vmul.f32 %v235, %v214
        %v238 = vrot.slane %v236, 7
        %v239 = vrot.slane %v238, 4
        %v241 = vadd.f32 %v233, %v239
        %s242 = sld [smem:[#allocation6]]
        %v243 = vstv %s242
        %v244 = vadd.f32 %v241, %v243
        %s245 = sld [smem:[#allocation2 + $0x80]]
        %v246 = vstv %s245
        %v247 = vmul.f32 %v246, %v214
        %s248 = sld [smem:[#allocation2 + $0x81]]
        %v249 = vstv %s248
        %v250 = vmul.f32 %v249, %v214
        %v252 = vrot.slane %v250, 5
        %v253 = vrot.slane %v252, 4
        %v255 = vadd.f32 %v247, %v253
        %s256 = sld [smem:[#allocation2 + $0x82]]
        %v257 = vstv %s256
        %v258 = vmul.f32 %v257, %v214
        %v260 = vrot.slane %v258, 6
        %v261 = vrot.slane %v260, 4
        %v263 = vadd.f32 %v255, %v261
        %s264 = sld [smem:[#allocation2 + $0x83]]
        %v265 = vstv %s264
        %v266 = vmul.f32 %v265, %v214
        %v268 = vrot.slane %v266, 7
        %v269 = vrot.slane %v268, 4
        %v271 = vadd.f32 %v263, %v269
        %s272 = sld [smem:[#allocation6 + $0x1]]
        %v273 = vstv %s272
        %v274 = vadd.f32 %v271, %v273
        %s275 = sld [smem:[#allocation2 + $0x100]]
        %v276 = vstv %s275
        %v277 = vmul.f32 %v276, %v214
        %s278 = sld [smem:[#allocation2 + $0x101]]
        %v279 = vstv %s278
        %v280 = vmul.f32 %v279, %v214
        %v282 = vrot.slane %v280, 5
        %v283 = vrot.slane %v282, 4
        %v285 = vadd.f32 %v277, %v283
        %s286 = sld [smem:[#allocation2 + $0x102]]
        %v287 = vstv %s286
        %v288 = vmul.f32 %v287, %v214
        %v290 = vrot.slane %v288, 6
        %v291 = vrot.slane %v290, 4
        %v293 = vadd.f32 %v285, %v291
        %s294 = sld [smem:[#allocation2 + $0x103]]
        %v295 = vstv %s294
        %v296 = vmul.f32 %v295, %v214
        %v298 = vrot.slane %v296, 7
        %v299 = vrot.slane %v298, 4
        %v301 = vadd.f32 %v293, %v299
        %s302 = sld [smem:[#allocation6 + $0x2]]
        %v303 = vstv %s302
        %v304 = vadd.f32 %v301, %v303
        %v306 = vlaneseq
        %v307 = vshrl.u32 %v306, 7
        %v308 = vsub.s32 0, %v307
        %v309 = vrot.slane %v244, %v308
        %v310 = vlaneseq
        %v311 = vshrl.u32 %v310, 7
        %v312 = vsub.s32 4, %v311
        %v313 = vrot.slane %v244, %v312
        %v317 = vlaneseq
        %v318 = vshrl.u32 %v317, 7
        %v319 = vsub.s32 0, %v318
        %v320 = vrot.slane %v274, %v319
        %v321 = vlaneseq
        %v322 = vshrl.u32 %v321, 7
        %v323 = vsub.s32 4, %v322
        %v324 = vrot.slane %v274, %v323
        %v328 = vlaneseq
        %v329 = vshrl.u32 %v328, 7
        %v330 = vsub.s32 0, %v329
        %v331 = vrot.slane %v304, %v330
        %v332 = vlaneseq
        %v333 = vshrl.u32 %v332, 7
        %v334 = vsub.s32 4, %v333
        %v335 = vrot.slane %v304, %v334
        %vm338 = vcmask 1040384
        %v339 = vsel %vm338, %v309, %v320
        %v340 = vsel %vm338, %v313, %v324
        %vm341 = vcmask 1041408
        %v342 = vsel %vm341, %v339, %v331
        %v343 = vsel %vm341, %v340, %v335
        %v346 = vcombine.low %v342, %v343
        %348 = vst [vmem:[%s213] sm:$0x77] %v346
        %p349 = scmp.lt.s32.totalorder %s19, 1
        %s350 = scalar_select %p349, %s19, 1
        %s351 = smul.addr %s350, 2
        %s352 = smul.addr %s351, 4
        %s353 = scalar_lea.vmem %s3, %s352
        // Predicated region
        $region45: #{tpu_custom_call.1} parent=31 // pred_check
          %p354 = pneg %p105
        $region46: #{tpu_custom_call.1} parent=31 // pred_check_branch
          %356 = sbr.rel (%p354) target = $region48
        $region47: #{tpu_custom_call.1} parent=31 // pred_region
          _
        $region48: #{tpu_custom_call.1} parent=31 // pred_fallthru
          _
      $region32: #{tpu_custom_call.1} parent=5 // pred_fallthru
        _
      %p357 = scmp.le.s32.totalorder 2, %s14
      // Predicated region
      $region49: #{tpu_custom_call.1} parent=5 // pred_check
        %p358 = pneg %p357
      $region50: #{tpu_custom_call.1} parent=5 // pred_check_branch
        %360 = sbr.rel (%p358) target = $region52
      $region51: #{tpu_custom_call.1} parent=5 // pred_region
        %s361 = ssub.s32 %s14, 2
        // Predicated region
        $region53: #{tpu_custom_call.1} parent=51 // pred_check
          %p362 = pneg %p111
        $region54: #{tpu_custom_call.1} parent=51 // pred_check_branch
          %364 = sbr.rel (%p362) target = $region56
        $region55: #{tpu_custom_call.1} parent=51 // pred_region
          %p365 = scmp.lt.s32.totalorder %s20, 1
          %s366 = scalar_select %p365, %s20, 1
          %s367 = smul.addr %s366, 2
          %s368 = smul.addr %s367, 4
          %s369 = scalar_lea.vmem %s3, %s368
        $region56: #{tpu_custom_call.1} parent=51 // pred_fallthru
          _
      $region52: #{tpu_custom_call.1} parent=5 // pred_fallthru
        _
    $region6: #{tpu_custom_call.1} parent=1 // loop_footer
      %s18 = sadd.s32 1, %s14
    $region7: #{tpu_custom_call.1} parent=1 // loop_footer_branch
      %13 = sbr.rel target = $region3
    $region8: #{tpu_custom_call.1} parent=1 // loop_exit
      _
    %370 = vsyncpa [#allocation3], 1
    %s371 = scalar_lea.sflag [#allocation3], 1
    %372 = vsyncpa %s371, 1
    %373 = vsyncpa [#allocation4], 1
    %s374 = scalar_lea.sflag [#allocation4], 1
    %375 = vsyncpa %s374, 1
    %376 = vsyncpa [#allocation5], 1
    %s377 = scalar_lea.sflag [#allocation5], 1
    %378 = vsyncpa %s377, 1

</llo_original>
